<compile_context>
chip_gen: v5e
topology: v5e:2x2
jax: 0.10.0
libtpu: 0.0.40
codegen_flags: <defaults>
</compile_context>

<pallas_src>
import jax
import jax.numpy as jnp
from jax.experimental import pallas as pl
from jax.experimental.pallas import tpu as pltpu

# ---- module hyper-parameters (small, consistent with the nn.Module) ----
B = 2        # batch
S = 8        # src_len
E = 16       # emb_dim
H = 32       # hidden_size
L = 2        # num_layers (GRU)
VOCAB = 32   # vocab_size

assert H % 8 == 0 and E % 8 == 0 and (E + H) % 8 == 0

# ---- packed-blob layout constants (all row offsets are multiples of 8) ----
AW = H                         # narrow (attention) blob width
A_W1 = 0                       # W1^T              (H rows)
A_B12 = H                      # b1 + b2           (1 row, padded to 8)
A_V = H + 8                    # V weight row      (1 row, padded to 8)
A_ROWS = H + 16

WW = 256                       # wide (GRU/FC) blob width = 2 lane tiles
W2_COL = 3 * H                 # W2 (attention dec-proj) block inside Whh, cols [96,128)
GH1_COL = 128                  # lane-tile-aligned column of the gh1 block
assert W2_COL + H <= GH1_COL and GH1_COL + 3 * H <= WW and VOCAB <= WW

G_WIH0 = 0                     # [Wih0_emb ; Wih0_ctx]^T : (E+H, 3H)
G_WIH1 = E + H                 # Wih1^T                  : (H, 3H)
G_WHH = E + 2 * H              # block-diag [Whh0 | W2 | Whh1] : (2H, WW)
G_BIH0 = E + 4 * H             # each bias: 1 row padded to 8
G_BHH0 = G_BIH0 + 8
G_BIH1 = G_BIH0 + 16
G_BHH1 = G_BIH0 + 24
G_FCW = G_BIH0 + 32            # fc weight^T             : (H, VOCAB)
G_FCB = G_FCW + H
G_ROWS = G_FCB + 8


def decoder_kernel(emb_ref, enc_ref, hcat_ref, wa_ref, wg_ref,
                   pred_ref, hid_out_ref, attn_ref):
    f32 = jnp.float32

    emb = emb_ref[...]                  # (B, E)   embedded prev tokens (eval: dropout = identity)
    enc = enc_ref[...]                  # (B, S, H)
    hcat = hcat_ref[...]                # (B, 2H) = [h0 | h1]
    h0 = hcat[:, 0:H]
    h1 = hcat[:, H:2 * H]               # last-layer hidden = attention query

    # ---- unpack parameter blobs (static 8-aligned ref slices = free views) ----
    w1t = wa_ref[A_W1:A_W1 + H, :]                    # (H, H)
    b12 = wa_ref[A_B12:A_B12 + 1, :]                  # (1, H)   b1 + b2 pre-summed
    vrow = wa_ref[A_V:A_V + 1, :]                     # (1, H)   V weight row

    wih0_t = wg_ref[G_WIH0:G_WIH0 + E + H, 0:3 * H]   # (E+H, 3H)
    wih1_t = wg_ref[G_WIH1:G_WIH1 + H, 0:3 * H]       # (H, 3H)
    whh_bd = wg_ref[G_WHH:G_WHH + 2 * H, :]           # (2H, WW) block-diag + W2 block
    bih0 = wg_ref[G_BIH0:G_BIH0 + 1, 0:3 * H]
    bhh0 = wg_ref[G_BHH0:G_BHH0 + 1, 0:3 * H]
    bih1 = wg_ref[G_BIH1:G_BIH1 + 1, 0:3 * H]
    bhh1 = wg_ref[G_BHH1:G_BHH1 + 1, 0:3 * H]
    fcw_t = wg_ref[G_FCW:G_FCW + H, 0:VOCAB]
    fcb = wg_ref[G_FCB:G_FCB + 1, 0:VOCAB]

    # ---- fused hidden-state matmul: [h0|h1] @ [Whh0 | W2 | Whh1] ----
    # Depends only on the incoming hidden, so it runs before attention and also
    # produces the attention dec-hidden projection (cols [96,128)) for free.
    gh = jnp.dot(hcat, whh_bd, preferred_element_type=f32)              # (B, WW)
    gh0 = gh[:, 0:3 * H] + bhh0
    dec_proj = gh[:, W2_COL:W2_COL + H]                                  # (B, H) = h1 @ W2^T
    gh1 = gh[:, GH1_COL:GH1_COL + 3 * H] + bhh1

    # ---- attention: e = tanh(W1*enc + W2*h1 + b1 + b2); score = e . v ----
    enc2 = enc.reshape(B * S, H)                      # layout no-op (8-aligned leading merge)
    enc_proj = jnp.dot(enc2, w1t, preferred_element_type=f32) + b12     # (B*S, H)
    e = jnp.tanh(enc_proj.reshape(B, S, H) + dec_proj[:, None, :])      # (B, S, H)
    # N=1 MXU matmul replaced by VPU mul + XLU lane-reduce; V bias cancels in softmax.
    score = jnp.sum(e * vrow[None, :, :], axis=-1, keepdims=True)       # (B, S, 1)

    s_max = jnp.max(score, axis=1, keepdims=True)
    p = jnp.exp(score - s_max)
    attn = p * pl.reciprocal(jnp.sum(p, axis=1, keepdims=True), approx=True)
    attn_ref[...] = attn
    context = jnp.sum(attn * enc, axis=1)                               # (B, H)

    # ---- GRU layer 0 + layer 1 (PyTorch gate order r, z, n; eval: no dropout) ----
    x0 = jnp.concatenate([emb, context], axis=-1)                       # (B, E+H)
    gi0 = jnp.dot(x0, wih0_t, preferred_element_type=f32) + bih0        # (B, 3H)

    r0 = jax.nn.sigmoid(gi0[:, 0:H] + gh0[:, 0:H])
    z0 = jax.nn.sigmoid(gi0[:, H:2 * H] + gh0[:, H:2 * H])
    n0 = jnp.tanh(gi0[:, 2 * H:3 * H] + r0 * gh0[:, 2 * H:3 * H])
    h0_new = (1.0 - z0) * n0 + z0 * h0

    gi1 = jnp.dot(h0_new, wih1_t, preferred_element_type=f32) + bih1    # (B, 3H)
    r1 = jax.nn.sigmoid(gi1[:, 0:H] + gh1[:, 0:H])
    z1 = jax.nn.sigmoid(gi1[:, H:2 * H] + gh1[:, H:2 * H])
    n1 = jnp.tanh(gi1[:, 2 * H:3 * H] + r1 * gh1[:, 2 * H:3 * H])
    h1_new = (1.0 - z1) * n1 + z1 * h1

    hid_out_ref[0] = h0_new
    hid_out_ref[1] = h1_new

    # ---- output projection fc: (B, H) -> (B, VOCAB) ----
    pred_ref[...] = jnp.dot(h1_new, fcw_t, preferred_element_type=f32) + fcb


def make_params(key):
    """Deterministic synthetic parameters (PyTorch shapes, pre-transposed for x @ W)."""
    ks = jax.random.split(key, 20)
    n = lambda k, shape, s=0.1: (s * jax.random.normal(k, shape)).astype(jnp.float32)
    p = {}
    p["emb_tbl"] = n(ks[0], (VOCAB, E), 0.5)
    p["w1t"] = n(ks[1], (H, H));   p["b1"] = n(ks[2], (1, H))
    p["w2t"] = n(ks[3], (H, H));   p["b2"] = n(ks[4], (1, H))
    p["vt"] = n(ks[5], (H, 1));    p["vb"] = n(ks[6], (1, 1))
    p["wih0e_t"] = n(ks[7], (E, 3 * H))
    p["wih0c_t"] = n(ks[8], (H, 3 * H))
    p["whh0_t"] = n(ks[9], (H, 3 * H))
    p["bih0"] = n(ks[10], (1, 3 * H));  p["bhh0"] = n(ks[11], (1, 3 * H), 0.05)
    p["wih1_t"] = n(ks[12], (H, 3 * H))
    p["whh1_t"] = n(ks[13], (H, 3 * H))
    p["bih1"] = n(ks[14], (1, 3 * H));  p["bhh1"] = n(ks[15], (1, 3 * H), 0.05)
    p["fcw_t"] = n(ks[16], (H, VOCAB)); p["fcb"] = n(ks[17], (1, VOCAB))
    return p


def pack_params(p):
    """Host-side packing of all weights into two contiguous f32 blobs."""
    f32 = jnp.float32

    def pad(a, rows, cols):
        a = a.astype(f32)
        return jnp.pad(a, ((0, rows - a.shape[0]), (0, cols - a.shape[1])))

    w_attn = jnp.concatenate([
        pad(p["w1t"], H, AW),
        pad(p["b1"] + p["b2"], 8, AW),     # biases pre-summed (added before tanh)
        pad(p["vt"].T, 8, AW),             # V as a row; V's bias cancels in softmax
    ], axis=0)
    assert w_attn.shape == (A_ROWS, AW)

    wih0_t = jnp.concatenate([p["wih0e_t"], p["wih0c_t"]], axis=0)      # (E+H, 3H)
    whh_bd = jnp.zeros((2 * H, WW), f32)
    whh_bd = whh_bd.at[0:H, 0:3 * H].set(p["whh0_t"])
    whh_bd = whh_bd.at[H:2 * H, W2_COL:W2_COL + H].set(p["w2t"])        # W2 acts on h1
    whh_bd = whh_bd.at[H:2 * H, GH1_COL:GH1_COL + 3 * H].set(p["whh1_t"])

    w_gru = jnp.concatenate([
        pad(wih0_t, E + H, WW),
        pad(p["wih1_t"], H, WW),
        pad(whh_bd, 2 * H, WW),
        pad(p["bih0"], 8, WW), pad(p["bhh0"], 8, WW),
        pad(p["bih1"], 8, WW), pad(p["bhh1"], 8, WW),
        pad(p["fcw_t"], H, WW),
        pad(p["fcb"], 8, WW),
    ], axis=0)
    assert w_gru.shape == (G_ROWS, WW)

    return {"emb_tbl": p["emb_tbl"].astype(f32), "w_attn": w_attn, "w_gru": w_gru}


def decoder_forward(x, enc_outputs, hidden, packed):
    """x: (B,) int32; enc_outputs: (B,S,H) f32; hidden: (L,B,H) f32; packed: pack_params(p)."""
    # Embedding lookup in the wrapper (nn.Dropout is identity in eval mode).
    emb = jnp.take(packed["emb_tbl"], x.astype(jnp.int32), axis=0)      # (B, E)
    # Hidden pre-concatenated as [h0 | h1] per batch row (free wrapper plumbing).
    hcat = jnp.transpose(hidden, (1, 0, 2)).reshape(B, L * H)           # (B, 2H)

    flops = (2 * B * (S * H * H + 2 * H * WW + (E + H) * 3 * H
                      + H * 3 * H + H * VOCAB) + 4 * B * S * H)
    transc = B * S * H + B * S + 6 * B * H + B
    bytes_accessed = 4 * (B * E + B * S * H + B * 2 * H + A_ROWS * AW + G_ROWS * WW
                          + B * VOCAB + L * B * H + B * S)
    cost = pl.CostEstimate(flops=flops, transcendentals=transc,
                           bytes_accessed=bytes_accessed)

    vmem = lambda: pl.BlockSpec(memory_space=pltpu.MemorySpace.VMEM)
    return pl.pallas_call(
        decoder_kernel,
        out_shape=(
            jax.ShapeDtypeStruct((B, VOCAB), jnp.float32),   # pred
            jax.ShapeDtypeStruct((L, B, H), jnp.float32),    # next hidden
            jax.ShapeDtypeStruct((B, S, 1), jnp.float32),    # attn weights
        ),
        in_specs=[vmem() for _ in range(5)],
        out_specs=(vmem(), vmem(), vmem()),
        cost_estimate=cost,
    )(emb, enc_outputs.astype(jnp.float32), hcat, packed["w_attn"], packed["w_gru"])


def decoder_reference(x, enc, hid, p):
    """Pure-JAX reference with the module's math (for verification)."""
    emb = p["emb_tbl"][x]
    dec_h = hid[-1]
    e = jnp.tanh((enc @ p["w1t"] + p["b1"]) + (dec_h @ p["w2t"] + p["b2"])[:, None, :])
    score = e @ p["vt"] + p["vb"]
    attn = jax.nn.softmax(score, axis=1)
    context = jnp.sum(attn * enc, axis=1)

    def gru(gi, h, whh_t, bhh):
        gh = h @ whh_t + bhh
        r = jax.nn.sigmoid(gi[:, :H] + gh[:, :H])
        z = jax.nn.sigmoid(gi[:, H:2 * H] + gh[:, H:2 * H])
        n = jnp.tanh(gi[:, 2 * H:] + r * gh[:, 2 * H:])
        return (1.0 - z) * n + z * h

    h0n = gru(emb @ p["wih0e_t"] + context @ p["wih0c_t"] + p["bih0"],
              hid[0], p["whh0_t"], p["bhh0"])
    h1n = gru(h0n @ p["wih1_t"] + p["bih1"], hid[1], p["whh1_t"], p["bhh1"])
    pred = h1n @ p["fcw_t"] + p["fcb"]
    return pred, jnp.stack([h0n, h1n]), attn


if __name__ == "__main__":
    key = jax.random.PRNGKey(0)
    k_x, k_enc, k_hid, k_p = jax.random.split(key, 4)

    x = jax.random.randint(k_x, (B,), 0, VOCAB, dtype=jnp.int32)
    enc_outputs = (0.5 * jax.random.normal(k_enc, (B, S, H))).astype(jnp.float32)
    hidden = (0.5 * jax.random.normal(k_hid, (L, B, H))).astype(jnp.float32)
    params = make_params(k_p)
    packed = pack_params(params)          # pack once; reused across decode steps

    fwd = jax.jit(decoder_forward)
    pred, hid_next, attn = jax.block_until_ready(fwd(x, enc_outputs, hidden, packed))
    pred_r, hid_r, attn_r = jax.block_until_ready(
        decoder_reference(x, enc_outputs, hidden, params))

    assert pred.shape == (B, VOCAB) and hid_next.shape == (L, B, H) and attn.shape == (B, S, 1)
    assert bool(jnp.all(jnp.isfinite(pred))) and bool(jnp.all(jnp.isfinite(hid_next)))
    assert jnp.allclose(pred, pred_r, rtol=2e-2, atol=2e-2)
    assert jnp.allclose(hid_next, hid_r, rtol=2e-2, atol=2e-2)
    assert jnp.allclose(attn, attn_r, rtol=2e-2, atol=2e-2)

    print("KERNEL_OK")
</pallas_src>

<mosaic_0001>
module attributes {stable_mosaic.version = 11 : i64} {
  func.func @decoder_kernel(%arg0: memref<2x16xf32, #tpu.memory_space<vmem>>, %arg1: memref<2x8x32xf32, #tpu.memory_space<vmem>>, %arg2: memref<2x64xf32, #tpu.memory_space<vmem>>, %arg3: memref<48x32xf32, #tpu.memory_space<vmem>>, %arg4: memref<216x256xf32, #tpu.memory_space<vmem>>, %arg5: memref<2x32xf32, #tpu.memory_space<vmem>>, %arg6: memref<2x2x32xf32, #tpu.memory_space<vmem>>, %arg7: memref<2x8x1xf32, #tpu.memory_space<vmem>>) attributes {dimension_semantics = [], scalar_prefetch = 0 : i64, scratch_operands = 0 : i64, tpu.core_type = #tpu.core_type<tc>} {
    %c0 = arith.constant 0 : index
    %c0_0 = arith.constant 0 : index
    %0 = vector.load %arg0[%c0, %c0_0] : memref<2x16xf32, #tpu.memory_space<vmem>>, vector<2x16xf32>
    %c0_1 = arith.constant 0 : index
    %c0_2 = arith.constant 0 : index
    %c0_3 = arith.constant 0 : index
    %1 = vector.load %arg1[%c0_1, %c0_2, %c0_3] : memref<2x8x32xf32, #tpu.memory_space<vmem>>, vector<2x8x32xf32>
    %c0_4 = arith.constant 0 : index
    %c0_5 = arith.constant 0 : index
    %2 = vector.load %arg2[%c0_4, %c0_5] : memref<2x64xf32, #tpu.memory_space<vmem>>, vector<2x64xf32>
    %3 = vector.extract_strided_slice %2 {offsets = [0, 0], sizes = [2, 32], strides = [1, 1]} : vector<2x64xf32> to vector<2x32xf32>
    %4 = vector.extract_strided_slice %2 {offsets = [0, 32], sizes = [2, 32], strides = [1, 1]} : vector<2x64xf32> to vector<2x32xf32>
    %c0_6 = arith.constant 0 : index
    %c0_7 = arith.constant 0 : index
    %5 = vector.load %arg3[%c0_6, %c0_7] : memref<48x32xf32, #tpu.memory_space<vmem>>, vector<32x32xf32>
    %c32 = arith.constant 32 : index
    %c0_8 = arith.constant 0 : index
    %6 = vector.load %arg3[%c32, %c0_8] : memref<48x32xf32, #tpu.memory_space<vmem>>, vector<1x32xf32>
    %c40 = arith.constant 40 : index
    %c0_9 = arith.constant 0 : index
    %7 = vector.load %arg3[%c40, %c0_9] : memref<48x32xf32, #tpu.memory_space<vmem>>, vector<1x32xf32>
    %c0_10 = arith.constant 0 : index
    %c0_11 = arith.constant 0 : index
    %8 = vector.load %arg4[%c0_10, %c0_11] : memref<216x256xf32, #tpu.memory_space<vmem>>, vector<48x96xf32>
    %c48 = arith.constant 48 : index
    %c0_12 = arith.constant 0 : index
    %9 = vector.load %arg4[%c48, %c0_12] : memref<216x256xf32, #tpu.memory_space<vmem>>, vector<32x96xf32>
    %c80 = arith.constant 80 : index
    %c0_13 = arith.constant 0 : index
    %10 = vector.load %arg4[%c80, %c0_13] : memref<216x256xf32, #tpu.memory_space<vmem>>, vector<64x256xf32>
    %c144 = arith.constant 144 : index
    %c0_14 = arith.constant 0 : index
    %11 = vector.load %arg4[%c144, %c0_14] : memref<216x256xf32, #tpu.memory_space<vmem>>, vector<1x96xf32>
    %c152 = arith.constant 152 : index
    %c0_15 = arith.constant 0 : index
    %12 = vector.load %arg4[%c152, %c0_15] : memref<216x256xf32, #tpu.memory_space<vmem>>, vector<1x96xf32>
    %c160 = arith.constant 160 : index
    %c0_16 = arith.constant 0 : index
    %13 = vector.load %arg4[%c160, %c0_16] : memref<216x256xf32, #tpu.memory_space<vmem>>, vector<1x96xf32>
    %c168 = arith.constant 168 : index
    %c0_17 = arith.constant 0 : index
    %14 = vector.load %arg4[%c168, %c0_17] : memref<216x256xf32, #tpu.memory_space<vmem>>, vector<1x96xf32>
    %c176 = arith.constant 176 : index
    %c0_18 = arith.constant 0 : index
    %15 = vector.load %arg4[%c176, %c0_18] : memref<216x256xf32, #tpu.memory_space<vmem>>, vector<32x32xf32>
    %c208 = arith.constant 208 : index
    %c0_19 = arith.constant 0 : index
    %16 = vector.load %arg4[%c208, %c0_19] : memref<216x256xf32, #tpu.memory_space<vmem>>, vector<1x32xf32>
    %cst = arith.constant dense<0.000000e+00> : vector<2x256xf32>
    %17 = tpu.matmul %2, %10, %cst {dimension_numbers = #tpu.dot_dimension_numbers<[1], [0], [0], [1], [0, 0, 1, 1], [], []>} : vector<2x64xf32>, vector<64x256xf32>, vector<2x256xf32> -> vector<2x256xf32>
    %18 = vector.extract_strided_slice %17 {offsets = [0, 0], sizes = [2, 96], strides = [1, 1]} : vector<2x256xf32> to vector<2x96xf32>
    %19 = vector.broadcast %12 : vector<1x96xf32> to vector<2x96xf32>
    %20 = arith.addf %18, %19 : vector<2x96xf32>
    %21 = vector.extract_strided_slice %17 {offsets = [0, 96], sizes = [2, 32], strides = [1, 1]} : vector<2x256xf32> to vector<2x32xf32>
    %22 = vector.extract_strided_slice %17 {offsets = [0, 128], sizes = [2, 96], strides = [1, 1]} : vector<2x256xf32> to vector<2x96xf32>
    %23 = vector.broadcast %14 : vector<1x96xf32> to vector<2x96xf32>
    %24 = arith.addf %22, %23 : vector<2x96xf32>
    %25 = vector.shape_cast %1 : vector<2x8x32xf32> to vector<16x32xf32>
    %cst_20 = arith.constant dense<0.000000e+00> : vector<16x32xf32>
    %26 = tpu.matmul %25, %5, %cst_20 {dimension_numbers = #tpu.dot_dimension_numbers<[1], [0], [0], [1], [0, 0, 1, 1], [], []>} : vector<16x32xf32>, vector<32x32xf32>, vector<16x32xf32> -> vector<16x32xf32>
    %27 = vector.broadcast %6 : vector<1x32xf32> to vector<16x32xf32>
    %28 = arith.addf %26, %27 : vector<16x32xf32>
    %29 = vector.shape_cast %28 : vector<16x32xf32> to vector<2x8x32xf32>
    %30 = vector.shape_cast %21 : vector<2x32xf32> to vector<2x1x32xf32>
    %31 = vector.broadcast %30 : vector<2x1x32xf32> to vector<2x8x32xf32>
    %32 = arith.addf %29, %31 : vector<2x8x32xf32>
    %33 = math.tanh %32 : vector<2x8x32xf32>
    %34 = vector.shape_cast %7 : vector<1x32xf32> to vector<1x1x32xf32>
    %35 = vector.broadcast %34 : vector<1x1x32xf32> to vector<2x8x32xf32>
    %36 = arith.mulf %33, %35 : vector<2x8x32xf32>
    %cst_21 = arith.constant dense<0.000000e+00> : vector<2x8xf32>
    %37 = vector.multi_reduction <add>, %36, %cst_21 [2] : vector<2x8x32xf32> to vector<2x8xf32>
    %38 = vector.shape_cast %37 : vector<2x8xf32> to vector<2x8x1xf32>
    %cst_22 = arith.constant dense<0xFF800000> : vector<2x1xf32>
    %39 = vector.multi_reduction <maximumf>, %38, %cst_22 [1] : vector<2x8x1xf32> to vector<2x1xf32>
    %40 = vector.shape_cast %39 : vector<2x1xf32> to vector<2x1x1xf32>
    %41 = vector.broadcast %40 : vector<2x1x1xf32> to vector<2x8x1xf32>
    %42 = arith.subf %38, %41 : vector<2x8x1xf32>
    %43 = math.exp %42 : vector<2x8x1xf32>
    %cst_23 = arith.constant dense<0.000000e+00> : vector<2x1xf32>
    %44 = vector.multi_reduction <add>, %43, %cst_23 [1] : vector<2x8x1xf32> to vector<2x1xf32>
    %45 = vector.shape_cast %44 : vector<2x1xf32> to vector<2x1x1xf32>
    %46 = tpu.reciprocal %45 {approx = true} : vector<2x1x1xf32> -> vector<2x1x1xf32>
    %47 = vector.broadcast %46 : vector<2x1x1xf32> to vector<2x8x1xf32>
    %48 = arith.mulf %43, %47 : vector<2x8x1xf32>
    %c0_24 = arith.constant 0 : index
    %c0_25 = arith.constant 0 : index
    %c0_26 = arith.constant 0 : index
    %49 = vector.load %arg7[%c0_24, %c0_25, %c0_26] : memref<2x8x1xf32, #tpu.memory_space<vmem>>, vector<2x8x1xf32>
    tpu.vector_store %arg7[%c0_24, %c0_25, %c0_26], %48 {strides = array<i32>} : memref<2x8x1xf32, #tpu.memory_space<vmem>>, vector<2x8x1xf32>,
    %50 = vector.broadcast %48 : vector<2x8x1xf32> to vector<2x8x32xf32>
    %51 = arith.mulf %50, %1 : vector<2x8x32xf32>
    %cst_27 = arith.constant dense<0.000000e+00> : vector<2x32xf32>
    %52 = vector.multi_reduction <add>, %51, %cst_27 [1] : vector<2x8x32xf32> to vector<2x32xf32>
    %53 = tpu.concatenate %0, %52 in 1 : vector<2x16xf32>, vector<2x32xf32> -> vector<2x48xf32>
    %cst_28 = arith.constant dense<0.000000e+00> : vector<2x96xf32>
    %54 = tpu.matmul %53, %8, %cst_28 {dimension_numbers = #tpu.dot_dimension_numbers<[1], [0], [0], [1], [0, 0, 1, 1], [], []>} : vector<2x48xf32>, vector<48x96xf32>, vector<2x96xf32> -> vector<2x96xf32>
    %55 = vector.broadcast %11 : vector<1x96xf32> to vector<2x96xf32>
    %56 = arith.addf %54, %55 : vector<2x96xf32>
    %57 = vector.extract_strided_slice %56 {offsets = [0, 0], sizes = [2, 32], strides = [1, 1]} : vector<2x96xf32> to vector<2x32xf32>
    %58 = vector.extract_strided_slice %20 {offsets = [0, 0], sizes = [2, 32], strides = [1, 1]} : vector<2x96xf32> to vector<2x32xf32>
    %59 = arith.addf %57, %58 : vector<2x32xf32>
    %60 = arith.negf %59 : vector<2x32xf32>
    %61 = math.exp %60 : vector<2x32xf32>
    %cst_29 = arith.constant 1.000000e+00 : f32
    %62 = vector.broadcast %cst_29 : f32 to vector<2x32xf32>
    %63 = arith.addf %62, %61 : vector<2x32xf32>
    %64 = arith.divf %62, %63 : vector<2x32xf32>
    %65 = vector.extract_strided_slice %56 {offsets = [0, 32], sizes = [2, 32], strides = [1, 1]} : vector<2x96xf32> to vector<2x32xf32>
    %66 = vector.extract_strided_slice %20 {offsets = [0, 32], sizes = [2, 32], strides = [1, 1]} : vector<2x96xf32> to vector<2x32xf32>
    %67 = arith.addf %65, %66 : vector<2x32xf32>
    %68 = arith.negf %67 : vector<2x32xf32>
    %69 = math.exp %68 : vector<2x32xf32>
    %cst_30 = arith.constant 1.000000e+00 : f32
    %70 = vector.broadcast %cst_30 : f32 to vector<2x32xf32>
    %71 = arith.addf %70, %69 : vector<2x32xf32>
    %72 = arith.divf %70, %71 : vector<2x32xf32>
    %73 = vector.extract_strided_slice %56 {offsets = [0, 64], sizes = [2, 32], strides = [1, 1]} : vector<2x96xf32> to vector<2x32xf32>
    %74 = vector.extract_strided_slice %20 {offsets = [0, 64], sizes = [2, 32], strides = [1, 1]} : vector<2x96xf32> to vector<2x32xf32>
    %75 = arith.mulf %64, %74 : vector<2x32xf32>
    %76 = arith.addf %73, %75 : vector<2x32xf32>
    %77 = math.tanh %76 : vector<2x32xf32>
    %cst_31 = arith.constant 1.000000e+00 : f32
    %78 = vector.broadcast %cst_31 : f32 to vector<2x32xf32>
    %79 = arith.subf %78, %72 : vector<2x32xf32>
    %80 = arith.mulf %79, %77 : vector<2x32xf32>
    %81 = arith.mulf %72, %3 : vector<2x32xf32>
    %82 = arith.addf %80, %81 : vector<2x32xf32>
    %cst_32 = arith.constant dense<0.000000e+00> : vector<2x96xf32>
    %83 = tpu.matmul %82, %9, %cst_32 {dimension_numbers = #tpu.dot_dimension_numbers<[1], [0], [0], [1], [0, 0, 1, 1], [], []>} : vector<2x32xf32>, vector<32x96xf32>, vector<2x96xf32> -> vector<2x96xf32>
    %84 = vector.broadcast %13 : vector<1x96xf32> to vector<2x96xf32>
    %85 = arith.addf %83, %84 : vector<2x96xf32>
    %86 = vector.extract_strided_slice %85 {offsets = [0, 0], sizes = [2, 32], strides = [1, 1]} : vector<2x96xf32> to vector<2x32xf32>
    %87 = vector.extract_strided_slice %24 {offsets = [0, 0], sizes = [2, 32], strides = [1, 1]} : vector<2x96xf32> to vector<2x32xf32>
    %88 = arith.addf %86, %87 : vector<2x32xf32>
    %89 = arith.negf %88 : vector<2x32xf32>
    %90 = math.exp %89 : vector<2x32xf32>
    %cst_33 = arith.constant 1.000000e+00 : f32
    %91 = vector.broadcast %cst_33 : f32 to vector<2x32xf32>
    %92 = arith.addf %91, %90 : vector<2x32xf32>
    %93 = arith.divf %91, %92 : vector<2x32xf32>
    %94 = vector.extract_strided_slice %85 {offsets = [0, 32], sizes = [2, 32], strides = [1, 1]} : vector<2x96xf32> to vector<2x32xf32>
    %95 = vector.extract_strided_slice %24 {offsets = [0, 32], sizes = [2, 32], strides = [1, 1]} : vector<2x96xf32> to vector<2x32xf32>
    %96 = arith.addf %94, %95 : vector<2x32xf32>
    %97 = arith.negf %96 : vector<2x32xf32>
    %98 = math.exp %97 : vector<2x32xf32>
    %cst_34 = arith.constant 1.000000e+00 : f32
    %99 = vector.broadcast %cst_34 : f32 to vector<2x32xf32>
    %100 = arith.addf %99, %98 : vector<2x32xf32>
    %101 = arith.divf %99, %100 : vector<2x32xf32>
    %102 = vector.extract_strided_slice %85 {offsets = [0, 64], sizes = [2, 32], strides = [1, 1]} : vector<2x96xf32> to vector<2x32xf32>
    %103 = vector.extract_strided_slice %24 {offsets = [0, 64], sizes = [2, 32], strides = [1, 1]} : vector<2x96xf32> to vector<2x32xf32>
    %104 = arith.mulf %93, %103 : vector<2x32xf32>
    %105 = arith.addf %102, %104 : vector<2x32xf32>
    %106 = math.tanh %105 : vector<2x32xf32>
    %cst_35 = arith.constant 1.000000e+00 : f32
    %107 = vector.broadcast %cst_35 : f32 to vector<2x32xf32>
    %108 = arith.subf %107, %101 : vector<2x32xf32>
    %109 = arith.mulf %108, %106 : vector<2x32xf32>
    %110 = arith.mulf %101, %4 : vector<2x32xf32>
    %111 = arith.addf %109, %110 : vector<2x32xf32>
    %c0_36 = arith.constant 0 : index
    %c0_37 = arith.constant 0 : index
    %c0_38 = arith.constant 0 : index
    %112 = vector.load %arg6[%c0_36, %c0_37, %c0_38] : memref<2x2x32xf32, #tpu.memory_space<vmem>>, vector<1x2x32xf32>
    %113 = vector.shape_cast %112 : vector<1x2x32xf32> to vector<2x32xf32>
    %114 = vector.shape_cast %82 : vector<2x32xf32> to vector<1x2x32xf32>
    tpu.vector_store %arg6[%c0_36, %c0_37, %c0_38], %114 {strides = array<i32>} : memref<2x2x32xf32, #tpu.memory_space<vmem>>, vector<1x2x32xf32>,
    %c1 = arith.constant 1 : index
    %c0_39 = arith.constant 0 : index
    %c0_40 = arith.constant 0 : index
    %115 = vector.load %arg6[%c1, %c0_39, %c0_40] : memref<2x2x32xf32, #tpu.memory_space<vmem>>, vector<1x2x32xf32>
    %116 = vector.shape_cast %115 : vector<1x2x32xf32> to vector<2x32xf32>
    %117 = vector.shape_cast %111 : vector<2x32xf32> to vector<1x2x32xf32>
    tpu.vector_store %arg6[%c1, %c0_39, %c0_40], %117 {strides = array<i32>} : memref<2x2x32xf32, #tpu.memory_space<vmem>>, vector<1x2x32xf32>,
    %cst_41 = arith.constant dense<0.000000e+00> : vector<2x32xf32>
    %118 = tpu.matmul %111, %15, %cst_41 {dimension_numbers = #tpu.dot_dimension_numbers<[1], [0], [0], [1], [0, 0, 1, 1], [], []>} : vector<2x32xf32>, vector<32x32xf32>, vector<2x32xf32> -> vector<2x32xf32>
    %119 = vector.broadcast %16 : vector<1x32xf32> to vector<2x32xf32>
    %120 = arith.addf %118, %119 : vector<2x32xf32>
    %c0_42 = arith.constant 0 : index
    %c0_43 = arith.constant 0 : index
    %121 = vector.load %arg5[%c0_42, %c0_43] : memref<2x32xf32, #tpu.memory_space<vmem>>, vector<2x32xf32>
    tpu.vector_store %arg5[%c0_42, %c0_43], %120 {strides = array<i32>} : memref<2x32xf32, #tpu.memory_space<vmem>>, vector<2x32xf32>,
    return
  }
}

</mosaic_0001>

<llo_original>
// kernel: decoder_forward.1
$region0: #{decoder_forward.1}
  #allocation0 [shape = 'u32[]', space=smem, size = 0x4, offset = 0x4, fixed_abs, tag = 'smem constant byte address 0x4 - core index']
  #allocation1 [shape = 'u32[72,128]{1,0:T(1,128)}', space=vmem, size = 0x9000, scoped, tag = 'internal scratch']
  %s0 = inlined_call_operand.vmem [shape: f32[2,16], index: 0, kind: input, shape index: {}]
  %s1 = inlined_call_operand.vmem [shape: f32[2,8,32], index: 1, kind: input, shape index: {}]
  %s2 = inlined_call_operand.vmem [shape: f32[2,64], index: 2, kind: input, shape index: {}]
  %s3 = inlined_call_operand.vmem [shape: f32[48,32], index: 3, kind: input, shape index: {}]
  %s4 = inlined_call_operand.hbm [shape: f32[216,256], index: 4, kind: input, shape index: {}]
  %s5 = inlined_call_operand.hbm [shape: f32[2,32], index: 5, kind: output, shape index: {0}]
  %s6 = inlined_call_operand.hbm [shape: f32[2,2,32], index: 6, kind: output, shape index: {1}]
  %s7 = inlined_call_operand.vmem [shape: f32[2,8,1], index: 7, kind: output, shape index: {2}]
  %8 = xla_tuple %s5, %s6, %s7
  %s9 = sld [smem:[#allocation0]]
  $region50: #{decoder_forward.1} parent=0
    _
  %s11 = ssub.s32 1, %s9
  %s12 = scalar_select 0, %s11, %s9
  $region1: #{decoder_forward.1} parent=0
    #allocation2 [shape = 'u8[221184]{0}', space=vmem, size = 0x36000, scoped, tag = 'input window, operand 4, single buffered']
    #allocation3 [shape = 's32[1]{0}', space=sflag, size = 0x4, scoped, tag = 'scoped memory for decoder_forward.1']
    #allocation4 [shape = 's32[1]{0}', space=sflag, size = 0x4, scoped, tag = 'scoped memory for decoder_forward.1']
    #allocation5 [shape = 'u8[1024]{0}', space=vmem, size = 0x400, scoped, tag = 'output window, operand 0, single buffered']
    #allocation6 [shape = 'u8[2048]{0}', space=vmem, size = 0x800, scoped, tag = 'output window, operand 1, single buffered']
    #allocation7 [shape = 's32[1]{0}', space=sflag, size = 0x4, scoped, tag = 'scoped memory for decoder_forward.1']
    %13 = vsyncpa [#allocation3], 0
    %14 = vsyncpa [#allocation4], 0
    %15 = vsyncpa [#allocation7], 0
    // Predicated region
    $region2: #{decoder_forward.1} parent=1 // pred_check
      _
    $region3: #{decoder_forward.1} parent=1 // pred_check_branch
      %17 = sbr.rel (0) target = $region5
    $region4: #{decoder_forward.1} parent=1 // pred_region
      _
    $region5: #{decoder_forward.1} parent=1 // pred_fallthru
      _
    // Predicated region
    $region6: #{decoder_forward.1} parent=1 // pred_check
      _
    $region7: #{decoder_forward.1} parent=1 // pred_check_branch
      %19 = sbr.rel (0) target = $region9
    $region8: #{decoder_forward.1} parent=1 // pred_region
      _
    $region9: #{decoder_forward.1} parent=1 // pred_fallthru
      _
    // Predicated region
    $region10: #{decoder_forward.1} parent=1 // pred_check
      _
    $region11: #{decoder_forward.1} parent=1 // pred_check_branch
      %21 = sbr.rel (0) target = $region13
    $region12: #{decoder_forward.1} parent=1 // pred_region
      _
    $region13: #{decoder_forward.1} parent=1 // pred_fallthru
      _
    // Predicated region
    $region14: #{decoder_forward.1} parent=1 // pred_check
      _
    $region15: #{decoder_forward.1} parent=1 // pred_check_branch
      %23 = sbr.rel (0) target = $region17
    $region16: #{decoder_forward.1} parent=1 // pred_region
      _
    $region17: #{decoder_forward.1} parent=1 // pred_fallthru
      _
    // Predicated region
    $region18: #{decoder_forward.1} parent=1 // pred_check
      _
    $region19: #{decoder_forward.1} parent=1 // pred_check_branch
      %25 = sbr.rel (0) target = $region21
    $region20: #{decoder_forward.1} parent=1 // pred_region
      %27 = vsyncadd [#allocation3], 0
      %s28 = sshll.u32 %s4, 4
      %s29 = int_to_ptr.hbm [resolvable:$true] %s28
      %s30 = sshll.u32 [#allocation2], 4
      %s31 = int_to_ptr.vmem [resolvable:$true] %s30
      %36 = dma.hbm_to_vmem [thread:$0]  %s29, 6912, %s31, [#allocation3], 256, 256, 16
    $region21: #{decoder_forward.1} parent=1 // pred_fallthru
      _
    // Predicated region
    $region22: #{decoder_forward.1} parent=1 // pred_check
      _
    $region23: #{decoder_forward.1} parent=1 // pred_check_branch
      %38 = sbr.rel (0) target = $region25
    $region24: #{decoder_forward.1} parent=1 // pred_region
      %40 = dma.done [#allocation3], 6912
    $region25: #{decoder_forward.1} parent=1 // pred_fallthru
      _
    %v41 = vld [vmem:[%s0] sm:$0x3]
    %v42 = vld [vmem:[%s1] sm:$0xff]
    %v43 = vld [vmem:[%s1 + $0x8] sm:$0xff]
    %v44 = vld [vmem:[%s2] sm:$0x3]
    %v45 = vld [vmem:[%s3] sm:$0xff]
    %v46 = vld [vmem:[%s3 + $0x8] sm:$0xff]
    %v47 = vld [vmem:[%s3 + $0x10] sm:$0xff]
    %v48 = vld [vmem:[%s3 + $0x18] sm:$0xff]
    %v49 = vld [vmem:[%s3 + $0x20] sm:$0x1]
    %v50 = vld [vmem:[%s3 + $0x28] sm:$0x1]
    %v51 = vld [vmem:[#allocation2] sm:$0xff]
    %v52 = vld [vmem:[#allocation2 + $0x10] sm:$0xff]
    %v53 = vld [vmem:[#allocation2 + $0x20] sm:$0xff]
    %v54 = vld [vmem:[#allocation2 + $0x30] sm:$0xff]
    %v55 = vld [vmem:[#allocation2 + $0x40] sm:$0xff]
    %v56 = vld [vmem:[#allocation2 + $0x50] sm:$0xff]
    %v57 = vld [vmem:[#allocation2 + $0x60] sm:$0xff]
    %v58 = vld [vmem:[#allocation2 + $0x70] sm:$0xff]
    %v59 = vld [vmem:[#allocation2 + $0x80] sm:$0xff]
    %v60 = vld [vmem:[#allocation2 + $0x90] sm:$0xff]
    %v61 = vld [vmem:[#allocation2 + $0xa0] sm:$0xff]
    %v62 = vld [vmem:[#allocation2 + $0xa8] sm:$0xff]
    %v63 = vld [vmem:[#allocation2 + $0xb0] sm:$0xff]
    %v64 = vld [vmem:[#allocation2 + $0xb8] sm:$0xff]
    %v65 = vld [vmem:[#allocation2 + $0xc0] sm:$0xff]
    %v66 = vld [vmem:[#allocation2 + $0xc8] sm:$0xff]
    %v67 = vld [vmem:[#allocation2 + $0xd0] sm:$0xff]
    %v68 = vld [vmem:[#allocation2 + $0xd8] sm:$0xff]
    %v69 = vld [vmem:[#allocation2 + $0xe0] sm:$0xff]
    %v70 = vld [vmem:[#allocation2 + $0xe8] sm:$0xff]
    %v71 = vld [vmem:[#allocation2 + $0xf0] sm:$0xff]
    %v72 = vld [vmem:[#allocation2 + $0xf8] sm:$0xff]
    %v73 = vld [vmem:[#allocation2 + $0x100] sm:$0xff]
    %v74 = vld [vmem:[#allocation2 + $0x108] sm:$0xff]
    %v75 = vld [vmem:[#allocation2 + $0x110] sm:$0xff]
    %v76 = vld [vmem:[#allocation2 + $0x118] sm:$0xff]
    %v77 = vld [vmem:[#allocation2 + $0x120] ss:$0 sm:$0xff]
    %v78 = vld [vmem:[#allocation2 + $0x130] ss:$0 sm:$0xff]
    %v79 = vld [vmem:[#allocation2 + $0x140] ss:$0 sm:$0xff]
    %v80 = vld [vmem:[#allocation2 + $0x150] ss:$0 sm:$0xff]
    %v81 = vld [vmem:[#allocation2 + $0x160] sm:$0xff]
    %v82 = vld [vmem:[#allocation2 + $0x170] sm:$0xff]
    %v83 = vld [vmem:[#allocation2 + $0x180] sm:$0xff]
    %v84 = vld [vmem:[#allocation2 + $0x190] sm:$0xff]
    %v85 = vld [vmem:[#allocation2 + $0x1a0] ss:$0 sm:$0xff]
    %vm86 = vcmask 523264
    %v88 = vsel %vm86, %v44, 0
    %90 = vmatpush.msra.mxu0 0.0
    %91 = vmatpush.msra.mxu0 0.0
    %92 = vmatpush.msra.mxu0 0.0
    %93 = vmatpush.msra.mxu0 0.0
    %94 = vmatpush.msra.mxu0 0.0
    %95 = vmatpush.msra.mxu0 0.0
    %96 = vmatpush.msra.mxu0 0.0
    %97 = vmatpush.msra.mxu0 0.0
    %98 = vmatpush.msra.mxu0 %v75
    %99 = vmatpush.msra.mxu0 %v73
    %100 = vmatpush.msra.mxu0 %v71
    %101 = vmatpush.msra.mxu0 %v69
    %102 = vmatpush.msra.mxu0 %v67
    %103 = vmatpush.msra.mxu0 %v65
    %104 = vmatpush.msra.mxu0 %v63
    %105 = vmatpush.msra.mxu0 %v61
    %106 = vmatmul.f32.gmra.mxu0 %v88
    %v107 = vpop.f32.mrf.mxu0
    %v108 = vadd.f32 0.0, %v107
    %109 = vdwg.mxu0
    %110 = vmatpush.msra.mxu0 0.0
    %111 = vmatpush.msra.mxu0 0.0
    %112 = vmatpush.msra.mxu0 0.0
    %113 = vmatpush.msra.mxu0 0.0
    %114 = vmatpush.msra.mxu0 0.0
    %115 = vmatpush.msra.mxu0 0.0
    %116 = vmatpush.msra.mxu0 0.0
    %117 = vmatpush.msra.mxu0 0.0
    %118 = vmatpush.msra.mxu0 %v76
    %119 = vmatpush.msra.mxu0 %v74
    %120 = vmatpush.msra.mxu0 %v72
    %121 = vmatpush.msra.mxu0 %v70
    %122 = vmatpush.msra.mxu0 %v68
    %123 = vmatpush.msra.mxu0 %v66
    %124 = vmatpush.msra.mxu0 %v64
    %125 = vmatpush.msra.mxu0 %v62
    %126 = vmatmul.f32.gmra.mxu0 %v88
    %v127 = vpop.f32.mrf.mxu0
    %v128 = vadd.f32 0.0, %v127
    %129 = vdwg.mxu0
    %v130 = vadd.f32 %v108, %v78
    %v131 = vadd.f32 %v128, %v80
    %v132 = vperm.slane %v49, 0
    %vm133 = vcmask 261120
    %v135 = vsel %vm133, %v42, 0
    %v138 = vsel %vm133, %v43, 0
    %140 = vmatpush.msra.mxu0 0.0
    %141 = vmatpush.msra.mxu0 0.0
    %142 = vmatpush.msra.mxu0 0.0
    %143 = vmatpush.msra.mxu0 0.0
    %144 = vmatpush.msra.mxu0 0.0
    %145 = vmatpush.msra.mxu0 0.0
    %146 = vmatpush.msra.mxu0 0.0
    %147 = vmatpush.msra.mxu0 0.0
    %148 = vmatpush.msra.mxu0 0.0
    %149 = vmatpush.msra.mxu0 0.0
    %150 = vmatpush.msra.mxu0 0.0
    %151 = vmatpush.msra.mxu0 0.0
    %152 = vmatpush.msra.mxu0 %v48
    %153 = vmatpush.msra.mxu0 %v47
    %154 = vmatpush.msra.mxu0 %v46
    %155 = vmatpush.msra.mxu0 %v45
    %156 = vmatmul.f32.gmra.mxu0 %v135
    %v157 = vpop.f32.mrf.mxu0
    %v158 = vadd.f32 %v132, %v157
    %159 = vmatmul.f32.gmra.mxu0 %v138
    %v160 = vpop.f32.mrf.mxu0
    %v161 = vadd.f32 %v132, %v160
    %162 = vdwg.mxu0
    %v164 = vrot.slane %v108, 1
    %v165 = vperm.slane %v108, 0
    %v166 = vperm.slane %v164, 0
    %167 = vrot.lane.b32.xlu0 %v165, 32
    %v168 = vpop.permute.xlu0 %167
    %169 = vrot.lane.b32.xlu0 %v166, 32
    %v170 = vpop.permute.xlu0 %169
    %v173 = vadd.f32 %v158, %v168
    %v174 = vadd.f32 %v161, %v170
    %v175 = vtanh.pop %v173
    %v176 = vtanh.pop %v174
    %v177 = vperm.slane %v50, 0
    %v178 = vmul.f32 %v175, %v177
    %v179 = vmul.f32 %v176, %v177
    %v180 = vsel %vm133, %v178, 0.0
    %181 = vadd.xlane.f32.xlu0 %v180
    %v182 = vpop.xlane.xlu0 %181
    %v183 = vsel %vm133, %v179, 0.0
    %184 = vadd.xlane.f32.xlu0 %v183
    %v185 = vpop.xlane.xlu0 %184
    %v186 = vrot.slane %v182, 4
    %v187 = vmax.f32 %v182, %v186
    %v188 = vrot.slane %v187, 2
    %v189 = vmax.f32 %v187, %v188
    %v190 = vrot.slane %v189, 1
    %v191 = vmax.f32 %v189, %v190
    %v192 = vrot.slane %v185, 4
    %v193 = vmax.f32 %v185, %v192
    %v194 = vrot.slane %v193, 2
    %v195 = vmax.f32 %v193, %v194
    %v196 = vrot.slane %v195, 1
    %v197 = vmax.f32 %v195, %v196
    %v198 = vsub.f32 %v182, %v191
    %v199 = vsub.f32 %v185, %v197
    %v200 = vmul.f32 %v198, 1.442695
    %v201 = vpow.pop %v200
    %v202 = vmul.f32 %v199, 1.442695
    %v203 = vpow.pop %v202
    %v204 = vrot.slane %v201, 4
    %v205 = vadd.f32 %v201, %v204
    %v206 = vrot.slane %v205, 2
    %v207 = vadd.f32 %v205, %v206
    %v208 = vrot.slane %v207, 1
    %v209 = vadd.f32 %v207, %v208
    %v210 = vrot.slane %v203, 4
    %v211 = vadd.f32 %v203, %v210
    %v212 = vrot.slane %v211, 2
    %v213 = vadd.f32 %v211, %v212
    %v214 = vrot.slane %v213, 1
    %v215 = vadd.f32 %v213, %v214
    %v216 = vrcp.pop %v209
    %v217 = vrcp.pop %v215
    %v218 = vmul.f32 %v201, %v216
    %v219 = vmul.f32 %v203, %v217
    %vm220 = vcmask 7168
    %221 = vst.msk [vmem:[%s7] sm:$0xff] %vm220, %v218
    %222 = vst.msk [vmem:[%s7 + $0x8] sm:$0xff] %vm220, %v219
    %v223 = vmul.f32 %v218, %v42
    %v224 = vmul.f32 %v219, %v43
    %v225 = vsel %vm133, %v223, 0.0
    %v226 = vrot.slane %v225, 4
    %v227 = vadd.f32 %v225, %v226
    %v228 = vrot.slane %v227, 2
    %v229 = vadd.f32 %v227, %v228
    %v230 = vrot.slane %v229, 1
    %v231 = vadd.f32 %v229, %v230
    %v232 = vsel %vm133, %v224, 0.0
    %v233 = vrot.slane %v232, 4
    %v234 = vadd.f32 %v232, %v233
    %v235 = vrot.slane %v234, 2
    %v236 = vadd.f32 %v234, %v235
    %v237 = vrot.slane %v236, 1
    %v238 = vadd.f32 %v236, %v237
    %vm241 = vcmask 1041409
    %v242 = vsel %vm241, %v238, %v231
    %243 = vrot.lane.b32.xlu0 %v242, 16
    %v244 = vpop.permute.xlu0 %243
    %vm246 = vcmask 130048
    %v247 = vsel %vm246, %v41, %v244
    %vm248 = vcmask 392192
    %v250 = vsel %vm248, %v247, 0
    %252 = vmatpush.msra.mxu0 0.0
    %253 = vmatpush.msra.mxu0 0.0
    %254 = vmatpush.msra.mxu0 0.0
    %255 = vmatpush.msra.mxu0 0.0
    %256 = vmatpush.msra.mxu0 0.0
    %257 = vmatpush.msra.mxu0 0.0
    %258 = vmatpush.msra.mxu0 0.0
    %259 = vmatpush.msra.mxu0 0.0
    %260 = vmatpush.msra.mxu0 0.0
    %261 = vmatpush.msra.mxu0 0.0
    %262 = vmatpush.msra.mxu0 %v56
    %263 = vmatpush.msra.mxu0 %v55
    %264 = vmatpush.msra.mxu0 %v54
    %265 = vmatpush.msra.mxu0 %v53
    %266 = vmatpush.msra.mxu0 %v52
    %267 = vmatpush.msra.mxu0 %v51
    %268 = vmatmul.f32.gmra.mxu0 %v250
    %v269 = vpop.f32.mrf.mxu0
    %v270 = vadd.f32 %v77, %v269
    %271 = vdwg.mxu0
    %v272 = vadd.f32 %v270, %v130
    %v273 = vxor.u32 %v272, 2147483648
    %v274 = vmul.f32 %v273, 1.442695
    %v275 = vpow.pop %v274
    %v276 = vadd.f32 %v275, 1.0
    %v277 = vrcp.pop %v276
    %v278 = vmul.f32 %v276, %v277
    %v279 = vsub.f32 1.0, %v278
    %v280 = vmul.f32 %v277, %v279
    %v281 = vadd.f32 %v277, %v280
    %vm282 = vweird.f32 %v276
    %vm283 = vweird.f32 %v277
    %vm284 = vmor %vm282, %vm283
    %v285 = vsel %vm284, %v277, %v281
    %v286 = vand.u32 2147483647, %v276
    %vm287 = vcmp.eq.f32.partialorder %v286, 8.507059e+37
    %v288 = vand.u32 %v276, 2147483648
    %v289 = vor.u32 1.1754944e-38, %v288
    %v290 = vsel %vm287, %v289, %v285
    %v291 = vmul.f32 1.0, %v290
    %293 = vrot.lane.b32.xlu0 %v130, 64
    %v294 = vpop.permute.xlu0 %293
    %v296 = vmul.f32 %v291, %v294
    %298 = vrot.lane.b32.xlu0 %v296, 64
    %v299 = vpop.permute.xlu0 %298
    %v301 = vadd.f32 %v270, %v299
    %v302 = vtanh.pop %v301
    %v303 = vsub.f32 1.0, %v291
    %305 = vrot.lane.b32.xlu0 %v302, 96
    %v306 = vpop.permute.xlu0 %305
    %v308 = vmul.f32 %v303, %v306
    %309 = vrot.lane.b32.xlu0 %v44, 32
    %v310 = vpop.permute.xlu0 %309
    %v312 = vmul.f32 %v291, %v310
    %v313 = vadd.f32 %v308, %v312
    %315 = vrot.lane.b32.xlu0 %v313, 96
    %v316 = vpop.permute.xlu0 %315
    %v317 = vsel %vm133, %v316, 0
    %319 = vmatpush.msra.mxu0 0.0
    %320 = vmatpush.msra.mxu0 0.0
    %321 = vmatpush.msra.mxu0 0.0
    %322 = vmatpush.msra.mxu0 0.0
    %323 = vmatpush.msra.mxu0 0.0
    %324 = vmatpush.msra.mxu0 0.0
    %325 = vmatpush.msra.mxu0 0.0
    %326 = vmatpush.msra.mxu0 0.0
    %327 = vmatpush.msra.mxu0 0.0
    %328 = vmatpush.msra.mxu0 0.0
    %329 = vmatpush.msra.mxu0 0.0
    %330 = vmatpush.msra.mxu0 0.0
    %331 = vmatpush.msra.mxu0 %v60
    %332 = vmatpush.msra.mxu0 %v59
    %333 = vmatpush.msra.mxu0 %v58
    %334 = vmatpush.msra.mxu0 %v57
    %335 = vmatmul.f32.gmra.mxu0 %v317
    %v336 = vpop.f32.mrf.mxu0
    %v337 = vadd.f32 %v79, %v336
    %338 = vdwg.mxu0
    %v339 = vadd.f32 %v337, %v131
    %v340 = vxor.u32 %v339, 2147483648
    %v341 = vmul.f32 %v340, 1.442695
    %v342 = vpow.pop %v341
    %v343 = vadd.f32 %v342, 1.0
    %v344 = vrcp.pop %v343
    %v345 = vmul.f32 %v343, %v344
    %v346 = vsub.f32 1.0, %v345
    %v347 = vmul.f32 %v344, %v346
    %v348 = vadd.f32 %v344, %v347
    %vm349 = vweird.f32 %v343
    %vm350 = vweird.f32 %v344
    %vm351 = vmor %vm349, %vm350
    %v352 = vsel %vm351, %v344, %v348
    %v353 = vand.u32 2147483647, %v343
    %vm354 = vcmp.eq.f32.partialorder %v353, 8.507059e+37
    %v355 = vand.u32 %v343, 2147483648
    %v356 = vor.u32 1.1754944e-38, %v355
    %v357 = vsel %vm354, %v356, %v352
    %v358 = vmul.f32 1.0, %v357
    %360 = vrot.lane.b32.xlu0 %v131, 64
    %v361 = vpop.permute.xlu0 %360
    %v363 = vmul.f32 %v358, %v361
    %365 = vrot.lane.b32.xlu0 %v363, 64
    %v366 = vpop.permute.xlu0 %365
    %v368 = vadd.f32 %v337, %v366
    %v369 = vtanh.pop %v368
    %v370 = vsub.f32 1.0, %v358
    %372 = vrot.lane.b32.xlu0 %v369, 96
    %v373 = vpop.permute.xlu0 %372
    %v375 = vmul.f32 %v370, %v373
    %v376 = vmul.f32 %v358, %v44
    %v377 = vadd.f32 %v375, %v376
    %vm379 = vcmask 254976
    %380 = vst.msk [vmem:[#allocation6] sm:$0x3] %vm379, %v316
    %382 = vrot.lane.b32.xlu0 %v377, 96
    %v383 = vpop.permute.xlu0 %382
    %s385 = scalar_lea.vmem [#allocation6], 2
    %386 = vst.msk [vmem:[%s385] sm:$0x3] %vm379, %v383
    %v387 = vsel %vm133, %v383, 0
    %389 = vmatpush.msra.mxu0 0.0
    %390 = vmatpush.msra.mxu0 0.0
    %391 = vmatpush.msra.mxu0 0.0
    %392 = vmatpush.msra.mxu0 0.0
    %393 = vmatpush.msra.mxu0 0.0
    %394 = vmatpush.msra.mxu0 0.0
    %395 = vmatpush.msra.mxu0 0.0
    %396 = vmatpush.msra.mxu0 0.0
    %397 = vmatpush.msra.mxu0 0.0
    %398 = vmatpush.msra.mxu0 0.0
    %399 = vmatpush.msra.mxu0 0.0
    %400 = vmatpush.msra.mxu0 0.0
    %401 = vmatpush.msra.mxu0 %v84
    %402 = vmatpush.msra.mxu0 %v83
    %403 = vmatpush.msra.mxu0 %v82
    %404 = vmatpush.msra.mxu0 %v81
    %405 = vmatmul.f32.gmra.mxu0 %v387
    %v406 = vpop.f32.mrf.mxu0
    %v407 = vadd.f32 %v85, %v406
    %408 = vdwg.mxu0
    %409 = vst.msk [vmem:[#allocation5] sm:$0x3] %vm379, %v407
    // Predicated region
    $region26: #{decoder_forward.1} parent=1 // pred_check
      _
    $region27: #{decoder_forward.1} parent=1 // pred_check_branch
      %411 = sbr.rel (0) target = $region29
    $region28: #{decoder_forward.1} parent=1 // pred_region
      %413 = vsyncadd [#allocation4], 0
      %s415 = sshll.u32 [#allocation5], 4
      %s416 = int_to_ptr.vmem [resolvable:$true] %s415
      %s417 = sshll.u32 %s5, 4
      %s418 = int_to_ptr.hbm [resolvable:$true] %s417
      %420 = dma.vmem_to_hbm [thread:$0]  %s416, 32, %s418, [#allocation4]
    $region29: #{decoder_forward.1} parent=1 // pred_fallthru
      _
    // Predicated region
    $region30: #{decoder_forward.1} parent=1 // pred_check
      _
    $region31: #{decoder_forward.1} parent=1 // pred_check_branch
      %422 = sbr.rel (0) target = $region33
    $region32: #{decoder_forward.1} parent=1 // pred_region
      %424 = vsyncadd [#allocation7], 0
      %s425 = sshll.u32 [#allocation6], 4
      %s426 = int_to_ptr.vmem [resolvable:$true] %s425
      %s427 = sshll.u32 %s6, 4
      %s428 = int_to_ptr.hbm [resolvable:$true] %s427
      %433 = dma.vmem_to_hbm [thread:$0]  %s426, 64, %s428, [#allocation7], 32, 32, 2
    $region33: #{decoder_forward.1} parent=1 // pred_fallthru
      _
    // Predicated region
    $region34: #{decoder_forward.1} parent=1 // pred_check
      _
    $region35: #{decoder_forward.1} parent=1 // pred_check_branch
      %435 = sbr.rel (0) target = $region37
    $region36: #{decoder_forward.1} parent=1 // pred_region
      _
    $region37: #{decoder_forward.1} parent=1 // pred_fallthru
      _
    // Predicated region
    $region38: #{decoder_forward.1} parent=1 // pred_check
      _
    $region39: #{decoder_forward.1} parent=1 // pred_check_branch
      %437 = sbr.rel (0) target = $region41
    $region40: #{decoder_forward.1} parent=1 // pred_region
      %439 = dma.done [#allocation4], 32
    $region41: #{decoder_forward.1} parent=1 // pred_fallthru
      _
    // Predicated region
    $region42: #{decoder_forward.1} parent=1 // pred_check
      _
    $region43: #{decoder_forward.1} parent=1 // pred_check_branch
      %441 = sbr.rel (0) target = $region45
    $region44: #{decoder_forward.1} parent=1 // pred_region
      %443 = dma.done [#allocation7], 64
    $region45: #{decoder_forward.1} parent=1 // pred_fallthru
      _
    // Predicated region
    $region46: #{decoder_forward.1} parent=1 // pred_check
      _
    $region47: #{decoder_forward.1} parent=1 // pred_check_branch
      %445 = sbr.rel (0) target = $region49
    $region48: #{decoder_forward.1} parent=1 // pred_region
      _
    $region49: #{decoder_forward.1} parent=1 // pred_fallthru
      _
    %446 = vsyncpa [#allocation3], 1
    %447 = vsyncpa [#allocation4], 1
    %448 = vsyncpa [#allocation7], 1

</llo_original>
